<compile_context>
chip_gen: v7x
topology: tpu7x:2x2x1
jax: 0.10.0
libtpu: 0.0.40
codegen_flags: <defaults>
</compile_context>

<pallas_src>
import numpy as np
import jax
import jax.numpy as jnp
from jax.experimental import pallas as pl
from jax.experimental.pallas import tpu as pltpu


def _round_up(x, m):
    return ((x + m - 1) // m) * m


def _nll_kernel(beta_ref, q_ref, t_ref, c_ref, llw_ref, intw_ref, out_ref):
    """Fused intensity + NLL epilogue.

    beta_ref : SMEM (1,)   beta
    q_ref    : [QP, 1]     query times (event times ++ integration grid, 0-pad)
    t_ref    : [1, NP]     fused event/rule times (0-pad)
    c_ref    : [NP, 1]     fused per-event coefficients (0-pad -> no contribution)
    llw_ref  : [QP, 1]     1.0 on type-0 event rows (log-likelihood weights)
    intw_ref : [QP, 1]     trapezoid weights on the grid rows, 0 elsewhere
    out_ref  : SMEM (1,1)  the scalar NLL
    """
    q = q_ref[...]                                         # [QP, 1]
    d = q - t_ref[...]                                     # [QP, NP] pairwise diffs
    # time_decay: exp(-dt) for dt > 0, else 0 (max() keeps exp's arg bounded).
    dec = jnp.where(d > 0.0, jnp.exp(-jnp.maximum(d, 0.0)), 0.0)

    # coefficient multiply + lane reduce as one full-precision MXU matvec.
    s = jnp.dot(dec, c_ref[...],
                preferred_element_type=jnp.float32,
                precision=jax.lax.Precision.HIGHEST)        # [QP, 1]

    beta = beta_ref[0]
    inv_beta = 1.0 / beta                                   # scalar unit, once
    x = beta * s
    # stable softplus: log1p(exp(x)) == max(x,0) + log1p(exp(-|x|))
    sp = jnp.maximum(x, 0.0) + jnp.log1p(jnp.exp(-jnp.abs(x)))
    lam = sp * inv_beta                                     # [QP, 1] intensities

    llw = llw_ref[...]
    log_lik = jnp.sum(jnp.where(llw > 0.0, jnp.log(lam), 0.0))
    integral = jnp.sum(intw_ref[...] * lam)
    out_ref[0, 0] = integral - log_lik                      # nll = -(ll - integral)


def rule_based_tpp_forward(params, event_times, event_types, event_meass,
                           rule_times, rule_types, rule_meass, num_samples=20):
    """Equivalent of RuleBasedTPP.forward -> scalar NLL (single pallas_call)."""
    N = event_times.shape[0]
    R = rule_times.shape[0]
    Q = N + num_samples
    QP = _round_up(Q, 8)                       # real query count, sublane-aligned
    NP = max(128, _round_up(N + R, 128))       # fused lane axis (events ++ rules)

    beta = jnp.asarray(params["beta"], jnp.float32).reshape((1,))

    # Glue: tiny per-event coefficient gathers stay in plain JAX.
    ev_coeff = (event_meass
                * params["numf_weights"][event_types]
                * params["numf_mask"][event_types]).astype(jnp.float32)
    ru_coeff = (rule_meass * params["rule_weights"][rule_types]).astype(jnp.float32)

    mask0 = (event_types == 0)
    # T_max = max(event_times[event_types == 0]); guard the no-type-0 case.
    T_max = jnp.max(jnp.where(mask0, event_times, -jnp.inf))
    T_max = jnp.where(jnp.isfinite(T_max), T_max, 0.0).astype(jnp.float32)
    t_values = jnp.linspace(0.0, T_max, num_samples).astype(jnp.float32)

    # trapezoid weights dt * [0.5, 1, ..., 1, 0.5]; pattern is a trace-time const.
    dt = T_max / jnp.float32(num_samples - 1)
    trap_pat = np.ones((num_samples,), np.float32)
    trap_pat[0] = 0.5
    trap_pat[-1] = 0.5
    trap_w = dt * jnp.asarray(trap_pat)

    # Padded kernel operands (static pads/concats only).
    q_col = jnp.pad(jnp.concatenate([event_times.astype(jnp.float32), t_values]),
                    (0, QP - Q))[:, None]                               # [QP, 1]
    t_row = jnp.pad(jnp.concatenate([event_times, rule_times]).astype(jnp.float32),
                    (0, NP - N - R))[None, :]                           # [1, NP]
    c_col = jnp.pad(jnp.concatenate([ev_coeff, ru_coeff]),
                    (0, NP - N - R))[:, None]                           # [NP, 1]
    ll_w = jnp.pad(mask0.astype(jnp.float32), (0, QP - N))[:, None]     # [QP, 1]
    int_w = jnp.pad(trap_w, (N, QP - Q))[:, None]                       # [QP, 1]

    nll = pl.pallas_call(
        _nll_kernel,
        out_shape=jax.ShapeDtypeStruct((1, 1), jnp.float32),
        in_specs=[
            pl.BlockSpec(memory_space=pltpu.MemorySpace.SMEM),   # beta (1,)
            pl.BlockSpec((QP, 1), lambda: (0, 0)),               # query times
            pl.BlockSpec((1, NP), lambda: (0, 0)),               # fused times
            pl.BlockSpec((NP, 1), lambda: (0, 0)),               # fused coeffs
            pl.BlockSpec((QP, 1), lambda: (0, 0)),               # log-lik weights
            pl.BlockSpec((QP, 1), lambda: (0, 0)),               # trapezoid weights
        ],
        out_specs=pl.BlockSpec(memory_space=pltpu.MemorySpace.SMEM),
    )(beta, q_col, t_row, c_col, ll_w, int_w)

    # TODO(synk): if this forward is called for many sequences, add a leading
    # batch grid axis with dimension_semantics=("parallel",) so v7x's 2nd
    # TensorCore is used and the per-call dispatch overhead is amortized.
    return nll[0, 0]


def reference_forward(params, event_times, event_types, event_meass,
                      rule_times, rule_types, rule_meass, num_samples=20):
    """Pure-JAX reference mirroring the PyTorch forward (for verification)."""
    def decay(dt):
        return jnp.where(dt <= 0.0, 0.0, jnp.exp(-jnp.maximum(dt, 0.0)))

    def intensity(given):
        rule_i = jnp.sum(rule_meass[None, :]
                         * decay(given[:, None] - rule_times[None, :])
                         * params["rule_weights"][rule_types][None, :], axis=1)
        numf_i = jnp.sum(event_meass[None, :]
                         * decay(given[:, None] - event_times[None, :])
                         * params["numf_weights"][event_types][None, :]
                         * params["numf_mask"][event_types][None, :], axis=1)
        s = rule_i + numf_i
        return jnp.log1p(jnp.exp(params["beta"] * s)) / params["beta"]

    mask0 = event_types == 0
    ll = jnp.sum(jnp.where(mask0, jnp.log(intensity(event_times)), 0.0))
    T_max = jnp.max(jnp.where(mask0, event_times, -jnp.inf))
    t_values = jnp.linspace(0.0, T_max, num_samples).astype(jnp.float32)
    y = intensity(t_values)
    dt = t_values[1:] - t_values[:-1]
    integral = jnp.sum(0.5 * (y[1:] + y[:-1]) * dt)
    return -(ll - integral)


if __name__ == "__main__":
    key = jax.random.PRNGKey(0)

    # Module "__init__" configuration (deterministic, synthetic).
    K = 4                      # len(var_name_dict)
    M = 3                      # len(rule_name_dict)
    rule_var_ids = (1, 2)      # variable ids used in rule expressions

    k1, k2, k3, k4, k5, k6 = jax.random.split(key, 6)
    params = {
        "mu": jnp.float32(0.1),        # defined in __init__ but unused in forward
        "beta": jnp.float32(1.0),
        "rule_weights": jax.random.uniform(k1, (M,), jnp.float32),
        "numf_weights": jax.random.uniform(k2, (K,), jnp.float32),
        "numf_mask": jnp.zeros((K,), jnp.float32)
                        .at[jnp.array((0,) + rule_var_ids)].set(1.0),
    }

    # Synthetic event / rule sequences.
    N, R = 8, 6
    event_times = jnp.sort(jax.random.uniform(k3, (N,), jnp.float32, 0.1, 5.0))
    event_types = jax.random.randint(k4, (N,), 0, K)
    event_types = event_types.at[0].set(0).at[N - 1].set(0)   # ensure type-0 events
    event_meass = jax.random.uniform(k5, (N,), jnp.float32, 0.5, 1.5)
    rule_times = jnp.sort(jax.random.uniform(k6, (R,), jnp.float32, 0.1, 5.0))
    rule_types = jax.random.randint(jax.random.fold_in(key, 7), (R,), 0, M)
    rule_meass = jax.random.uniform(jax.random.fold_in(key, 8), (R,), jnp.float32, 0.5, 1.5)

    fwd = jax.jit(rule_based_tpp_forward)
    nll = jax.block_until_ready(
        fwd(params, event_times, event_types, event_meass,
            rule_times, rule_types, rule_meass))

    ref = reference_forward(params, event_times, event_types, event_meass,
                            rule_times, rule_types, rule_meass)

    assert jnp.isfinite(nll), f"non-finite NLL: {nll}"
    assert jnp.allclose(nll, ref, rtol=1e-3, atol=1e-3), (nll, ref)
    print("KERNEL_OK")
</pallas_src>

<mosaic_0001>
module attributes {stable_mosaic.version = 11 : i64} {
  func.func @_nll_kernel(%arg0: memref<1xf32, #tpu.memory_space<smem>>, %arg1: memref<32x1xf32, #tpu.memory_space<vmem>>, %arg2: memref<1x128xf32, #tpu.memory_space<vmem>>, %arg3: memref<128x1xf32, #tpu.memory_space<vmem>>, %arg4: memref<32x1xf32, #tpu.memory_space<vmem>>, %arg5: memref<32x1xf32, #tpu.memory_space<vmem>>, %arg6: memref<1x1xf32, #tpu.memory_space<smem>>) attributes {dimension_semantics = [], scalar_prefetch = 0 : i64, scratch_operands = 0 : i64, tpu.core_type = #tpu.core_type<tc>} {
    %c0 = arith.constant 0 : index
    %c0_0 = arith.constant 0 : index
    %0 = vector.load %arg1[%c0, %c0_0] : memref<32x1xf32, #tpu.memory_space<vmem>>, vector<32x1xf32>
    %c0_1 = arith.constant 0 : index
    %c0_2 = arith.constant 0 : index
    %1 = vector.load %arg2[%c0_1, %c0_2] : memref<1x128xf32, #tpu.memory_space<vmem>>, vector<1x128xf32>
    %2 = vector.broadcast %0 : vector<32x1xf32> to vector<32x128xf32>
    %3 = vector.broadcast %1 : vector<1x128xf32> to vector<32x128xf32>
    %4 = arith.subf %2, %3 : vector<32x128xf32>
    %cst = arith.constant 0.000000e+00 : f32
    %5 = vector.broadcast %cst : f32 to vector<32x128xf32>
    %6 = arith.cmpf ogt, %4, %5 : vector<32x128xf32>
    %cst_3 = arith.constant 0.000000e+00 : f32
    %7 = vector.broadcast %cst_3 : f32 to vector<32x128xf32>
    %8 = arith.maximumf %4, %7 : vector<32x128xf32>
    %cst_4 = arith.constant 0.000000e+00 : f32
    %9 = vector.broadcast %cst_4 : f32 to vector<32x128xf32>
    %10 = arith.subf %9, %8 : vector<32x128xf32>
    %11 = math.exp %10 : vector<32x128xf32>
    %cst_5 = arith.constant 0.000000e+00 : f32
    %12 = vector.broadcast %cst_5 : f32 to vector<32x128xf32>
    %13 = arith.select %6, %11, %12 : vector<32x128xi1>, vector<32x128xf32>
    %c0_6 = arith.constant 0 : index
    %c0_7 = arith.constant 0 : index
    %14 = vector.load %arg3[%c0_6, %c0_7] : memref<128x1xf32, #tpu.memory_space<vmem>>, vector<128x1xf32>
    %cst_8 = arith.constant dense<0.000000e+00> : vector<32x1xf32>
    %15 = tpu.matmul %13, %14, %cst_8 {dimension_numbers = #tpu.dot_dimension_numbers<[1], [0], [0], [1], [0, 0, 1, 1], [], []>, precision = #tpu.contract_precision<fp32>} : vector<32x128xf32>, vector<128x1xf32>, vector<32x1xf32> -> vector<32x1xf32>
    %c0_9 = arith.constant 0 : index
    %16 = memref.load %arg0[%c0_9] : memref<1xf32, #tpu.memory_space<smem>>
    %cst_10 = arith.constant 1.000000e+00 : f32
    %17 = arith.divf %cst_10, %16 : f32
    %18 = vector.broadcast %16 : f32 to vector<32x1xf32>
    %19 = arith.mulf %18, %15 : vector<32x1xf32>
    %cst_11 = arith.constant 0.000000e+00 : f32
    %20 = vector.broadcast %cst_11 : f32 to vector<32x1xf32>
    %21 = arith.maximumf %19, %20 : vector<32x1xf32>
    %22 = math.absf %19 : vector<32x1xf32>
    %cst_12 = arith.constant 0.000000e+00 : f32
    %23 = vector.broadcast %cst_12 : f32 to vector<32x1xf32>
    %24 = arith.subf %23, %22 : vector<32x1xf32>
    %25 = math.exp %24 : vector<32x1xf32>
    %26 = math.log1p %25 : vector<32x1xf32>
    %27 = arith.addf %21, %26 : vector<32x1xf32>
    %28 = vector.broadcast %17 : f32 to vector<32x1xf32>
    %29 = arith.mulf %27, %28 : vector<32x1xf32>
    %c0_13 = arith.constant 0 : index
    %c0_14 = arith.constant 0 : index
    %30 = vector.load %arg4[%c0_13, %c0_14] : memref<32x1xf32, #tpu.memory_space<vmem>>, vector<32x1xf32>
    %cst_15 = arith.constant 0.000000e+00 : f32
    %31 = vector.broadcast %cst_15 : f32 to vector<32x1xf32>
    %32 = arith.cmpf ogt, %30, %31 : vector<32x1xf32>
    %33 = math.log %29 : vector<32x1xf32>
    %cst_16 = arith.constant 0.000000e+00 : f32
    %34 = vector.broadcast %cst_16 : f32 to vector<32x1xf32>
    %35 = arith.select %32, %33, %34 : vector<32x1xi1>, vector<32x1xf32>
    %36 = vector.shape_cast %35 : vector<32x1xf32> to vector<1x32x1xf32>
    %cst_17 = arith.constant dense<0.000000e+00> : vector<1xf32>
    %37 = vector.multi_reduction <add>, %36, %cst_17 [1, 2] : vector<1x32x1xf32> to vector<1xf32>
    %38 = vector.shape_cast %37 : vector<1xf32> to vector<1x1x1xf32>
    %39 = vector.extract %38[0, 0, 0] : f32 from vector<1x1x1xf32>
    %c0_18 = arith.constant 0 : index
    %c0_19 = arith.constant 0 : index
    %40 = vector.load %arg5[%c0_18, %c0_19] : memref<32x1xf32, #tpu.memory_space<vmem>>, vector<32x1xf32>
    %41 = arith.mulf %40, %29 : vector<32x1xf32>
    %42 = vector.shape_cast %41 : vector<32x1xf32> to vector<1x32x1xf32>
    %cst_20 = arith.constant dense<0.000000e+00> : vector<1xf32>
    %43 = vector.multi_reduction <add>, %42, %cst_20 [1, 2] : vector<1x32x1xf32> to vector<1xf32>
    %44 = vector.shape_cast %43 : vector<1xf32> to vector<1x1x1xf32>
    %45 = vector.extract %44[0, 0, 0] : f32 from vector<1x1x1xf32>
    %46 = arith.subf %45, %39 : f32
    %c0_21 = arith.constant 0 : index
    %c0_22 = arith.constant 0 : index
    %47 = memref.load %arg6[%c0_21, %c0_22] : memref<1x1xf32, #tpu.memory_space<smem>>
    memref.store %46, %arg6[%c0_21, %c0_22] : memref<1x1xf32, #tpu.memory_space<smem>>
    return
  }
}

</mosaic_0001>

<llo_original>
// kernel: mul.23
$region0: #{mul.23}
  #allocation0 [shape = 's32[1]{0}', space=sflag, size = 0x4, scoped, tag = 'scoped memory for mul.23']
  %s0 = inlined_call_operand.vmem [shape: f32[6], index: 0, kind: input, shape index: {}]
  %s1 = inlined_call_operand.vmem [shape: f32[6], index: 1, kind: input, shape index: {}]
  %s2 = inlined_call_operand.vmem [shape: f32[6], index: 2, kind: output, shape index: {}]
  %v3 = vld [vmem:[%s0] sm:$0x1]
  %v4 = vld [vmem:[%s1] sm:$0x1]
  %5 = xla_tuple %v3, %v4
  %6 = xla_tuple %5
  %v7 = vmul.f32 %v3, %v4
  %8 = xla_tuple %v7
  %9 = vst [vmem:[%s2] sm:$0x1] %v7

// kernel: rule_based_tpp_forward.1
$region0: #{rule_based_tpp_forward.1}
  #allocation0 [shape = 'u32[]', space=smem, size = 0x4, offset = 0x4, fixed_abs, tag = 'smem constant byte address 0x4 - core index']
  #allocation1 [shape = 'u32[144,128]{1,0:T(1,128)}', space=vmem, size = 0x12000, scoped, tag = 'internal scratch']
  #allocation2 [shape = 'f32[1]{0:T(128)S(6)}', space=smem, size = 0x200, scoped, tag = 'scoped memory for rule_based_tpp_forward.1']
  %s0 = inlined_call_operand.<no memory space> [shape: f32[1], index: 0, kind: input, shape index: {}]
  %s1 = inlined_call_operand.vmem [shape: f32[32,1], index: 1, kind: input, shape index: {}]
  %s2 = inlined_call_operand.vmem [shape: f32[1,128], index: 2, kind: input, shape index: {}]
  %s3 = inlined_call_operand.vmem [shape: f32[128,1], index: 3, kind: input, shape index: {}]
  %s4 = inlined_call_operand.vmem [shape: f32[32,1], index: 4, kind: input, shape index: {}]
  %s5 = inlined_call_operand.vmem [shape: f32[32,1], index: 5, kind: input, shape index: {}]
  %s6 = inlined_call_operand.hbm [shape: f32[1,1], index: 6, kind: output, shape index: {}]
  %s7 = sld [smem:[#allocation0]]
  $region34: #{rule_based_tpp_forward.1} parent=0
    _
  %s9 = ssub.s32 1, %s7
  %s10 = scalar_select 0, %s9, %s7
  %11 = sst [smem:[#allocation2]] %s0
  $region1: #{rule_based_tpp_forward.1} parent=0
    #allocation3 [shape = 'u8[512]{0}', space=smem, size = 0x200, scoped, tag = 'output window, operand 0, single buffered']
    #allocation4 [shape = 's32[1]{0}', space=sflag, size = 0x4, scoped, tag = 'scoped memory for rule_based_tpp_forward.1']
    %12 = vsyncpa [#allocation4], 0
    // Predicated region
    $region2: #{rule_based_tpp_forward.1} parent=1 // pred_check
      _
    $region3: #{rule_based_tpp_forward.1} parent=1 // pred_check_branch
      %14 = sbr.rel (0) target = $region5
    $region4: #{rule_based_tpp_forward.1} parent=1 // pred_region
      _
    $region5: #{rule_based_tpp_forward.1} parent=1 // pred_fallthru
      _
    // Predicated region
    $region6: #{rule_based_tpp_forward.1} parent=1 // pred_check
      _
    $region7: #{rule_based_tpp_forward.1} parent=1 // pred_check_branch
      %16 = sbr.rel (0) target = $region9
    $region8: #{rule_based_tpp_forward.1} parent=1 // pred_region
      _
    $region9: #{rule_based_tpp_forward.1} parent=1 // pred_fallthru
      _
    // Predicated region
    $region10: #{rule_based_tpp_forward.1} parent=1 // pred_check
      _
    $region11: #{rule_based_tpp_forward.1} parent=1 // pred_check_branch
      %18 = sbr.rel (0) target = $region13
    $region12: #{rule_based_tpp_forward.1} parent=1 // pred_region
      _
    $region13: #{rule_based_tpp_forward.1} parent=1 // pred_fallthru
      _
    // Predicated region
    $region14: #{rule_based_tpp_forward.1} parent=1 // pred_check
      _
    $region15: #{rule_based_tpp_forward.1} parent=1 // pred_check_branch
      %20 = sbr.rel (0) target = $region17
    $region16: #{rule_based_tpp_forward.1} parent=1 // pred_region
      _
    $region17: #{rule_based_tpp_forward.1} parent=1 // pred_fallthru
      _
    // Predicated region
    $region18: #{rule_based_tpp_forward.1} parent=1 // pred_check
      _
    $region19: #{rule_based_tpp_forward.1} parent=1 // pred_check_branch
      %22 = sbr.rel (0) target = $region21
    $region20: #{rule_based_tpp_forward.1} parent=1 // pred_region
      _
    $region21: #{rule_based_tpp_forward.1} parent=1 // pred_fallthru
      _
    // Predicated region
    $region22: #{rule_based_tpp_forward.1} parent=1 // pred_check
      _
    $region23: #{rule_based_tpp_forward.1} parent=1 // pred_check_branch
      %24 = sbr.rel (0) target = $region25
    $region24: #{rule_based_tpp_forward.1} parent=1 // pred_region
      _
    $region25: #{rule_based_tpp_forward.1} parent=1 // pred_fallthru
      _
    %v25 = vld [vmem:[%s1] sm:$0xff]
    %v26 = vld [vmem:[%s1 + $0x8] sm:$0xff]
    %v27 = vld [vmem:[%s1 + $0x10] sm:$0xff]
    %v28 = vld [vmem:[%s1 + $0x18] sm:$0xff]
    %v29 = vld [vmem:[%s2] sm:$0x1]
    %31 = vset.pattern.permute.xlu0 0
    %32 = vperm.xlu0 %31, %v25
    %v33 = vpop.permute.xlu0 %32
    %36 = vset.pattern.permute.xlu0 0
    %37 = vperm.xlu0 %36, %v26
    %v38 = vpop.permute.xlu0 %37
    %41 = vset.pattern.permute.xlu0 0
    %42 = vperm.xlu0 %41, %v27
    %v43 = vpop.permute.xlu0 %42
    %46 = vset.pattern.permute.xlu0 0
    %47 = vperm.xlu0 %46, %v28
    %v48 = vpop.permute.xlu0 %47
    %v51 = vlaneseq
    %v52 = vshrl.u32 %v51, 7
    %v53 = vsub.s32 0, %v52
    %v54 = vrot.slane %v29, %v53
    %v56 = vsub.f32 %v33, %v54
    %v57 = vsub.f32 %v38, %v54
    %v58 = vsub.f32 %v43, %v54
    %v59 = vsub.f32 %v48, %v54
    %vm60 = vcmp.gt.f32.partialorder %v56, 0.0
    %vm61 = vcmp.gt.f32.partialorder %v57, 0.0
    %vm62 = vcmp.gt.f32.partialorder %v58, 0.0
    %vm63 = vcmp.gt.f32.partialorder %v59, 0.0
    %v64 = vmax.f32 %v56, 0.0
    %v65 = vmax.f32 %v57, 0.0
    %v66 = vmax.f32 %v58, 0.0
    %v67 = vmax.f32 %v59, 0.0
    %v68 = vsub.f32 0.0, %v64
    %v69 = vsub.f32 0.0, %v65
    %v70 = vsub.f32 0.0, %v66
    %v71 = vsub.f32 0.0, %v67
    %v72 = vmul.f32 %v68, 1.442695
    %v73 = vpow.pop %v72
    %v74 = vmul.f32 %v69, 1.442695
    %v75 = vpow.pop %v74
    %v76 = vmul.f32 %v70, 1.442695
    %v77 = vpow.pop %v76
    %v78 = vmul.f32 %v71, 1.442695
    %v79 = vpow.pop %v78
    %v80 = vsel %vm60, %v73, 0.0
    %v81 = vsel %vm61, %v75, 0.0
    %v82 = vsel %vm62, %v77, 0.0
    %v83 = vsel %vm63, %v79, 0.0
    %v84 = vld [vmem:[%s3] sm:$0xff]
    %v85 = vld [vmem:[%s3 + $0x8] sm:$0xff]
    %v86 = vld [vmem:[%s3 + $0x10] sm:$0xff]
    %v87 = vld [vmem:[%s3 + $0x18] sm:$0xff]
    %v88 = vld [vmem:[%s3 + $0x20] sm:$0xff]
    %v89 = vld [vmem:[%s3 + $0x28] sm:$0xff]
    %v90 = vld [vmem:[%s3 + $0x30] sm:$0xff]
    %v91 = vld [vmem:[%s3 + $0x38] sm:$0xff]
    %v92 = vld [vmem:[%s3 + $0x40] sm:$0xff]
    %v93 = vld [vmem:[%s3 + $0x48] sm:$0xff]
    %v94 = vld [vmem:[%s3 + $0x50] sm:$0xff]
    %v95 = vld [vmem:[%s3 + $0x58] sm:$0xff]
    %v96 = vld [vmem:[%s3 + $0x60] sm:$0xff]
    %v97 = vld [vmem:[%s3 + $0x68] sm:$0xff]
    %v98 = vld [vmem:[%s3 + $0x70] sm:$0xff]
    %v99 = vld [vmem:[%s3 + $0x78] sm:$0xff]
    %100 = vmatprep.subr.mxu0 0.0
    %v101 = vand.u32 %v84, 4294901760
    %102 = vmatpush1.msra.mxu0 %v101
    %103 = vmatprep.subr.mxu0 0.0
    %v104 = vand.u32 %v85, 4294901760
    %105 = vmatpush1.msra.mxu0 %v104
    %106 = vmatprep.subr.mxu0 0.0
    %v107 = vand.u32 %v86, 4294901760
    %108 = vmatpush1.msra.mxu0 %v107
    %109 = vmatprep.subr.mxu0 0.0
    %v110 = vand.u32 %v87, 4294901760
    %111 = vmatpush1.msra.mxu0 %v110
    %112 = vmatprep.subr.mxu0 0.0
    %v113 = vand.u32 %v88, 4294901760
    %114 = vmatpush1.msra.mxu0 %v113
    %115 = vmatprep.subr.mxu0 0.0
    %v116 = vand.u32 %v89, 4294901760
    %117 = vmatpush1.msra.mxu0 %v116
    %118 = vmatprep.subr.mxu0 0.0
    %v119 = vand.u32 %v90, 4294901760
    %120 = vmatpush1.msra.mxu0 %v119
    %121 = vmatprep.subr.mxu0 0.0
    %v122 = vand.u32 %v91, 4294901760
    %123 = vmatpush1.msra.mxu0 %v122
    %124 = vmatprep.subr.mxu0 0.0
    %v125 = vand.u32 %v92, 4294901760
    %126 = vmatpush1.msra.mxu0 %v125
    %127 = vmatprep.subr.mxu0 0.0
    %v128 = vand.u32 %v93, 4294901760
    %129 = vmatpush1.msra.mxu0 %v128
    %130 = vmatprep.subr.mxu0 0.0
    %v131 = vand.u32 %v94, 4294901760
    %132 = vmatpush1.msra.mxu0 %v131
    %133 = vmatprep.subr.mxu0 0.0
    %v134 = vand.u32 %v95, 4294901760
    %135 = vmatpush1.msra.mxu0 %v134
    %136 = vmatprep.subr.mxu0 0.0
    %v137 = vand.u32 %v96, 4294901760
    %138 = vmatpush1.msra.mxu0 %v137
    %139 = vmatprep.subr.mxu0 0.0
    %v140 = vand.u32 %v97, 4294901760
    %141 = vmatpush1.msra.mxu0 %v140
    %142 = vmatprep.subr.mxu0 0.0
    %v143 = vand.u32 %v98, 4294901760
    %144 = vmatpush1.msra.mxu0 %v143
    %145 = vmatprep.subr.mxu0 0.0
    %v146 = vand.u32 %v99, 4294901760
    %147 = vmatpush1.msra.mxu0 %v146
    %148 = vmatprep.subr.mxu0 0.0
    %149 = vmatpush1.msra.mxu0 0.0
    %150 = vmatprep.subr.mxu0 0.0
    %151 = vmatpush1.msra.mxu0 0.0
    %152 = vmatprep.subr.mxu0 0.0
    %153 = vmatpush1.msra.mxu0 0.0
    %154 = vmatprep.subr.mxu0 0.0
    %155 = vmatpush1.msra.mxu0 0.0
    %156 = vmatprep.subr.mxu0 0.0
    %157 = vmatpush1.msra.mxu0 0.0
    %158 = vmatprep.subr.mxu0 0.0
    %159 = vmatpush1.msra.mxu0 0.0
    %160 = vmatprep.subr.mxu0 0.0
    %161 = vmatpush1.msra.mxu0 0.0
    %162 = vmatprep.subr.mxu0 0.0
    %163 = vmatpush1.msra.mxu0 0.0
    %164 = vmatprep.subr.mxu0 0.0
    %165 = vmatpush1.msra.mxu0 0.0
    %166 = vmatprep.subr.mxu0 0.0
    %167 = vmatpush1.msra.mxu0 0.0
    %168 = vmatprep.subr.mxu0 0.0
    %169 = vmatpush1.msra.mxu0 0.0
    %170 = vmatprep.subr.mxu0 0.0
    %171 = vmatpush1.msra.mxu0 0.0
    %172 = vmatprep.subr.mxu0 0.0
    %173 = vmatpush1.msra.mxu0 0.0
    %174 = vmatprep.subr.mxu0 0.0
    %175 = vmatpush1.msra.mxu0 0.0
    %176 = vmatprep.subr.mxu0 0.0
    %177 = vmatpush1.msra.mxu0 0.0
    %178 = vmatprep.subr.mxu0 0.0
    %179 = vmatpush1.msra.mxu0 0.0
    %180 = vmatprep.mubr.f32.mxu0 0.0
    %v181 = vand.u32 %v80, 4294901760
    %v182 = vsub.f32 %v80, %v181
    %v183 = vand.u32 %v182, 4294901760
    %v184 = vsub.f32 %v182, %v183
    %v185 = vand.u32 %v184, 4294901760
    %186 = vmatmul.mubr.f32.gmra.mrb[0].mxu0 %v185
    %v187 = vpop.f32.mrb[0].mxu0
    %v188 = vadd.f32 0.0, %v187
    %v189 = vpop.f32.mrb[0].mxu0
    %190 = vmatprep.mubr.f32.mxu0 0.0
    %v191 = vand.u32 %v81, 4294901760
    %v192 = vsub.f32 %v81, %v191
    %v193 = vand.u32 %v192, 4294901760
    %v194 = vsub.f32 %v192, %v193
    %v195 = vand.u32 %v194, 4294901760
    %196 = vmatmul.mubr.f32.gmra.mrb[0].mxu0 %v195
    %v197 = vpop.f32.mrb[0].mxu0
    %v198 = vadd.f32 0.0, %v197
    %v199 = vpop.f32.mrb[0].mxu0
    %200 = vmatprep.mubr.f32.mxu0 0.0
    %v201 = vand.u32 %v82, 4294901760
    %v202 = vsub.f32 %v82, %v201
    %v203 = vand.u32 %v202, 4294901760
    %v204 = vsub.f32 %v202, %v203
    %v205 = vand.u32 %v204, 4294901760
    %206 = vmatmul.mubr.f32.gmra.mrb[0].mxu0 %v205
    %v207 = vpop.f32.mrb[0].mxu0
    %v208 = vadd.f32 0.0, %v207
    %v209 = vpop.f32.mrb[0].mxu0
    %210 = vmatprep.mubr.f32.mxu0 0.0
    %v211 = vand.u32 %v83, 4294901760
    %v212 = vsub.f32 %v83, %v211
    %v213 = vand.u32 %v212, 4294901760
    %v214 = vsub.f32 %v212, %v213
    %v215 = vand.u32 %v214, 4294901760
    %216 = vmatmul.mubr.f32.gmra.mrb[0].mxu0 %v215
    %v217 = vpop.f32.mrb[0].mxu0
    %v218 = vadd.f32 0.0, %v217
    %v219 = vpop.f32.mrb[0].mxu0
    %220 = vdwg.mxu0
    %221 = vmatprep.subr.mxu0 0.0
    %v222 = vand.u32 %v84, 4294901760
    %v223 = vsub.f32 %v84, %v222
    %v224 = vand.u32 %v223, 4294901760
    %v225 = vsub.f32 %v223, %v224
    %v226 = vand.u32 %v225, 4294901760
    %227 = vmatpush1.msra.mxu0 %v226
    %228 = vmatprep.subr.mxu0 0.0
    %v229 = vand.u32 %v85, 4294901760
    %v230 = vsub.f32 %v85, %v229
    %v231 = vand.u32 %v230, 4294901760
    %v232 = vsub.f32 %v230, %v231
    %v233 = vand.u32 %v232, 4294901760
    %234 = vmatpush1.msra.mxu0 %v233
    %235 = vmatprep.subr.mxu0 0.0
    %v236 = vand.u32 %v86, 4294901760
    %v237 = vsub.f32 %v86, %v236
    %v238 = vand.u32 %v237, 4294901760
    %v239 = vsub.f32 %v237, %v238
    %v240 = vand.u32 %v239, 4294901760
    %241 = vmatpush1.msra.mxu0 %v240
    %242 = vmatprep.subr.mxu0 0.0
    %v243 = vand.u32 %v87, 4294901760
    %v244 = vsub.f32 %v87, %v243
    %v245 = vand.u32 %v244, 4294901760
    %v246 = vsub.f32 %v244, %v245
    %v247 = vand.u32 %v246, 4294901760
    %248 = vmatpush1.msra.mxu0 %v247
    %249 = vmatprep.subr.mxu0 0.0
    %v250 = vand.u32 %v88, 4294901760
    %v251 = vsub.f32 %v88, %v250
    %v252 = vand.u32 %v251, 4294901760
    %v253 = vsub.f32 %v251, %v252
    %v254 = vand.u32 %v253, 4294901760
    %255 = vmatpush1.msra.mxu0 %v254
    %256 = vmatprep.subr.mxu0 0.0
    %v257 = vand.u32 %v89, 4294901760
    %v258 = vsub.f32 %v89, %v257
    %v259 = vand.u32 %v258, 4294901760
    %v260 = vsub.f32 %v258, %v259
    %v261 = vand.u32 %v260, 4294901760
    %262 = vmatpush1.msra.mxu0 %v261
    %263 = vmatprep.subr.mxu0 0.0
    %v264 = vand.u32 %v90, 4294901760
    %v265 = vsub.f32 %v90, %v264
    %v266 = vand.u32 %v265, 4294901760
    %v267 = vsub.f32 %v265, %v266
    %v268 = vand.u32 %v267, 4294901760
    %269 = vmatpush1.msra.mxu0 %v268
    %270 = vmatprep.subr.mxu0 0.0
    %v271 = vand.u32 %v91, 4294901760
    %v272 = vsub.f32 %v91, %v271
    %v273 = vand.u32 %v272, 4294901760
    %v274 = vsub.f32 %v272, %v273
    %v275 = vand.u32 %v274, 4294901760
    %276 = vmatpush1.msra.mxu0 %v275
    %277 = vmatprep.subr.mxu0 0.0
    %v278 = vand.u32 %v92, 4294901760
    %v279 = vsub.f32 %v92, %v278
    %v280 = vand.u32 %v279, 4294901760
    %v281 = vsub.f32 %v279, %v280
    %v282 = vand.u32 %v281, 4294901760
    %283 = vmatpush1.msra.mxu0 %v282
    %284 = vmatprep.subr.mxu0 0.0
    %v285 = vand.u32 %v93, 4294901760
    %v286 = vsub.f32 %v93, %v285
    %v287 = vand.u32 %v286, 4294901760
    %v288 = vsub.f32 %v286, %v287
    %v289 = vand.u32 %v288, 4294901760
    %290 = vmatpush1.msra.mxu0 %v289
    %291 = vmatprep.subr.mxu0 0.0
    %v292 = vand.u32 %v94, 4294901760
    %v293 = vsub.f32 %v94, %v292
    %v294 = vand.u32 %v293, 4294901760
    %v295 = vsub.f32 %v293, %v294
    %v296 = vand.u32 %v295, 4294901760
    %297 = vmatpush1.msra.mxu0 %v296
    %298 = vmatprep.subr.mxu0 0.0
    %v299 = vand.u32 %v95, 4294901760
    %v300 = vsub.f32 %v95, %v299
    %v301 = vand.u32 %v300, 4294901760
    %v302 = vsub.f32 %v300, %v301
    %v303 = vand.u32 %v302, 4294901760
    %304 = vmatpush1.msra.mxu0 %v303
    %305 = vmatprep.subr.mxu0 0.0
    %v306 = vand.u32 %v96, 4294901760
    %v307 = vsub.f32 %v96, %v306
    %v308 = vand.u32 %v307, 4294901760
    %v309 = vsub.f32 %v307, %v308
    %v310 = vand.u32 %v309, 4294901760
    %311 = vmatpush1.msra.mxu0 %v310
    %312 = vmatprep.subr.mxu0 0.0
    %v313 = vand.u32 %v97, 4294901760
    %v314 = vsub.f32 %v97, %v313
    %v315 = vand.u32 %v314, 4294901760
    %v316 = vsub.f32 %v314, %v315
    %v317 = vand.u32 %v316, 4294901760
    %318 = vmatpush1.msra.mxu0 %v317
    %319 = vmatprep.subr.mxu0 0.0
    %v320 = vand.u32 %v98, 4294901760
    %v321 = vsub.f32 %v98, %v320
    %v322 = vand.u32 %v321, 4294901760
    %v323 = vsub.f32 %v321, %v322
    %v324 = vand.u32 %v323, 4294901760
    %325 = vmatpush1.msra.mxu0 %v324
    %326 = vmatprep.subr.mxu0 0.0
    %v327 = vand.u32 %v99, 4294901760
    %v328 = vsub.f32 %v99, %v327
    %v329 = vand.u32 %v328, 4294901760
    %v330 = vsub.f32 %v328, %v329
    %v331 = vand.u32 %v330, 4294901760
    %332 = vmatpush1.msra.mxu0 %v331
    %333 = vmatprep.subr.mxu0 0.0
    %334 = vmatpush1.msra.mxu0 0.0
    %335 = vmatprep.subr.mxu0 0.0
    %336 = vmatpush1.msra.mxu0 0.0
    %337 = vmatprep.subr.mxu0 0.0
    %338 = vmatpush1.msra.mxu0 0.0
    %339 = vmatprep.subr.mxu0 0.0
    %340 = vmatpush1.msra.mxu0 0.0
    %341 = vmatprep.subr.mxu0 0.0
    %342 = vmatpush1.msra.mxu0 0.0
    %343 = vmatprep.subr.mxu0 0.0
    %344 = vmatpush1.msra.mxu0 0.0
    %345 = vmatprep.subr.mxu0 0.0
    %346 = vmatpush1.msra.mxu0 0.0
    %347 = vmatprep.subr.mxu0 0.0
    %348 = vmatpush1.msra.mxu0 0.0
    %349 = vmatprep.subr.mxu0 0.0
    %350 = vmatpush1.msra.mxu0 0.0
    %351 = vmatprep.subr.mxu0 0.0
    %352 = vmatpush1.msra.mxu0 0.0
    %353 = vmatprep.subr.mxu0 0.0
    %354 = vmatpush1.msra.mxu0 0.0
    %355 = vmatprep.subr.mxu0 0.0
    %356 = vmatpush1.msra.mxu0 0.0
    %357 = vmatprep.subr.mxu0 0.0
    %358 = vmatpush1.msra.mxu0 0.0
    %359 = vmatprep.subr.mxu0 0.0
    %360 = vmatpush1.msra.mxu0 0.0
    %361 = vmatprep.subr.mxu0 0.0
    %362 = vmatpush1.msra.mxu0 0.0
    %363 = vmatprep.subr.mxu0 0.0
    %364 = vmatpush1.msra.mxu0 0.0
    %365 = vmatprep.mubr.f32.mxu0 0.0
    %v366 = vand.u32 %v80, 4294901760
    %367 = vmatmul.mubr.f32.gmra.mrb[0].mxu0 %v366
    %v368 = vpop.f32.mrb[0].mxu0
    %v369 = vadd.f32 %v188, %v368
    %v370 = vpop.f32.mrb[0].mxu0
    %371 = vmatprep.mubr.f32.mxu0 0.0
    %v372 = vand.u32 %v81, 4294901760
    %373 = vmatmul.mubr.f32.gmra.mrb[0].mxu0 %v372
    %v374 = vpop.f32.mrb[0].mxu0
    %v375 = vadd.f32 %v198, %v374
    %v376 = vpop.f32.mrb[0].mxu0
    %377 = vmatprep.mubr.f32.mxu0 0.0
    %v378 = vand.u32 %v82, 4294901760
    %379 = vmatmul.mubr.f32.gmra.mrb[0].mxu0 %v378
    %v380 = vpop.f32.mrb[0].mxu0
    %v381 = vadd.f32 %v208, %v380
    %v382 = vpop.f32.mrb[0].mxu0
    %383 = vmatprep.mubr.f32.mxu0 0.0
    %v384 = vand.u32 %v83, 4294901760
    %385 = vmatmul.mubr.f32.gmra.mrb[0].mxu0 %v384
    %v386 = vpop.f32.mrb[0].mxu0
    %v387 = vadd.f32 %v218, %v386
    %v388 = vpop.f32.mrb[0].mxu0
    %389 = vdwg.mxu0
    %390 = vmatprep.subr.mxu0 0.0
    %v391 = vand.u32 %v84, 4294901760
    %v392 = vsub.f32 %v84, %v391
    %393 = vmatpush1.msra.mxu0 %v392
    %394 = vmatprep.subr.mxu0 0.0
    %v395 = vand.u32 %v85, 4294901760
    %v396 = vsub.f32 %v85, %v395
    %397 = vmatpush1.msra.mxu0 %v396
    %398 = vmatprep.subr.mxu0 0.0
    %v399 = vand.u32 %v86, 4294901760
    %v400 = vsub.f32 %v86, %v399
    %401 = vmatpush1.msra.mxu0 %v400
    %402 = vmatprep.subr.mxu0 0.0
    %v403 = vand.u32 %v87, 4294901760
    %v404 = vsub.f32 %v87, %v403
    %405 = vmatpush1.msra.mxu0 %v404
    %406 = vmatprep.subr.mxu0 0.0
    %v407 = vand.u32 %v88, 4294901760
    %v408 = vsub.f32 %v88, %v407
    %409 = vmatpush1.msra.mxu0 %v408
    %410 = vmatprep.subr.mxu0 0.0
    %v411 = vand.u32 %v89, 4294901760
    %v412 = vsub.f32 %v89, %v411
    %413 = vmatpush1.msra.mxu0 %v412
    %414 = vmatprep.subr.mxu0 0.0
    %v415 = vand.u32 %v90, 4294901760
    %v416 = vsub.f32 %v90, %v415
    %417 = vmatpush1.msra.mxu0 %v416
    %418 = vmatprep.subr.mxu0 0.0
    %v419 = vand.u32 %v91, 4294901760
    %v420 = vsub.f32 %v91, %v419
    %421 = vmatpush1.msra.mxu0 %v420
    %422 = vmatprep.subr.mxu0 0.0
    %v423 = vand.u32 %v92, 4294901760
    %v424 = vsub.f32 %v92, %v423
    %425 = vmatpush1.msra.mxu0 %v424
    %426 = vmatprep.subr.mxu0 0.0
    %v427 = vand.u32 %v93, 4294901760
    %v428 = vsub.f32 %v93, %v427
    %429 = vmatpush1.msra.mxu0 %v428
    %430 = vmatprep.subr.mxu0 0.0
    %v431 = vand.u32 %v94, 4294901760
    %v432 = vsub.f32 %v94, %v431
    %433 = vmatpush1.msra.mxu0 %v432
    %434 = vmatprep.subr.mxu0 0.0
    %v435 = vand.u32 %v95, 4294901760
    %v436 = vsub.f32 %v95, %v435
    %437 = vmatpush1.msra.mxu0 %v436
    %438 = vmatprep.subr.mxu0 0.0
    %v439 = vand.u32 %v96, 4294901760
    %v440 = vsub.f32 %v96, %v439
    %441 = vmatpush1.msra.mxu0 %v440
    %442 = vmatprep.subr.mxu0 0.0
    %v443 = vand.u32 %v97, 4294901760
    %v444 = vsub.f32 %v97, %v443
    %445 = vmatpush1.msra.mxu0 %v444
    %446 = vmatprep.subr.mxu0 0.0
    %v447 = vand.u32 %v98, 4294901760
    %v448 = vsub.f32 %v98, %v447
    %449 = vmatpush1.msra.mxu0 %v448
    %450 = vmatprep.subr.mxu0 0.0
    %v451 = vand.u32 %v99, 4294901760
    %v452 = vsub.f32 %v99, %v451
    %453 = vmatpush1.msra.mxu0 %v452
    %454 = vmatprep.subr.mxu0 0.0
    %455 = vmatpush1.msra.mxu0 0.0
    %456 = vmatprep.subr.mxu0 0.0
    %457 = vmatpush1.msra.mxu0 0.0
    %458 = vmatprep.subr.mxu0 0.0
    %459 = vmatpush1.msra.mxu0 0.0
    %460 = vmatprep.subr.mxu0 0.0
    %461 = vmatpush1.msra.mxu0 0.0
    %462 = vmatprep.subr.mxu0 0.0
    %463 = vmatpush1.msra.mxu0 0.0
    %464 = vmatprep.subr.mxu0 0.0
    %465 = vmatpush1.msra.mxu0 0.0
    %466 = vmatprep.subr.mxu0 0.0
    %467 = vmatpush1.msra.mxu0 0.0
    %468 = vmatprep.subr.mxu0 0.0
    %469 = vmatpush1.msra.mxu0 0.0
    %470 = vmatprep.subr.mxu0 0.0
    %471 = vmatpush1.msra.mxu0 0.0
    %472 = vmatprep.subr.mxu0 0.0
    %473 = vmatpush1.msra.mxu0 0.0
    %474 = vmatprep.subr.mxu0 0.0
    %475 = vmatpush1.msra.mxu0 0.0
    %476 = vmatprep.subr.mxu0 0.0
    %477 = vmatpush1.msra.mxu0 0.0
    %478 = vmatprep.subr.mxu0 0.0
    %479 = vmatpush1.msra.mxu0 0.0
    %480 = vmatprep.subr.mxu0 0.0
    %481 = vmatpush1.msra.mxu0 0.0
    %482 = vmatprep.subr.mxu0 0.0
    %483 = vmatpush1.msra.mxu0 0.0
    %484 = vmatprep.subr.mxu0 0.0
    %485 = vmatpush1.msra.mxu0 0.0
    %486 = vmatprep.mubr.f32.mxu0 0.0
    %v487 = vand.u32 %v80, 4294901760
    %v488 = vsub.f32 %v80, %v487
    %489 = vmatmul.mubr.f32.gmra.mrb[0].mxu0 %v488
    %v490 = vpop.f32.mrb[0].mxu0
    %v491 = vadd.f32 %v369, %v490
    %v492 = vpop.f32.mrb[0].mxu0
    %493 = vmatprep.mubr.f32.mxu0 0.0
    %v494 = vand.u32 %v81, 4294901760
    %v495 = vsub.f32 %v81, %v494
    %496 = vmatmul.mubr.f32.gmra.mrb[0].mxu0 %v495
    %v497 = vpop.f32.mrb[0].mxu0
    %v498 = vadd.f32 %v375, %v497
    %v499 = vpop.f32.mrb[0].mxu0
    %500 = vmatprep.mubr.f32.mxu0 0.0
    %v501 = vand.u32 %v82, 4294901760
    %v502 = vsub.f32 %v82, %v501
    %503 = vmatmul.mubr.f32.gmra.mrb[0].mxu0 %v502
    %v504 = vpop.f32.mrb[0].mxu0
    %v505 = vadd.f32 %v381, %v504
    %v506 = vpop.f32.mrb[0].mxu0
    %507 = vmatprep.mubr.f32.mxu0 0.0
    %v508 = vand.u32 %v83, 4294901760
    %v509 = vsub.f32 %v83, %v508
    %510 = vmatmul.mubr.f32.gmra.mrb[0].mxu0 %v509
    %v511 = vpop.f32.mrb[0].mxu0
    %v512 = vadd.f32 %v387, %v511
    %v513 = vpop.f32.mrb[0].mxu0
    %514 = vdwg.mxu0
    %515 = vmatprep.subr.mxu0 0.0
    %v516 = vand.u32 %v84, 4294901760
    %517 = vmatpush1.msra.mxu0 %v516
    %518 = vmatprep.subr.mxu0 0.0
    %v519 = vand.u32 %v85, 4294901760
    %520 = vmatpush1.msra.mxu0 %v519
    %521 = vmatprep.subr.mxu0 0.0
    %v522 = vand.u32 %v86, 4294901760
    %523 = vmatpush1.msra.mxu0 %v522
    %524 = vmatprep.subr.mxu0 0.0
    %v525 = vand.u32 %v87, 4294901760
    %526 = vmatpush1.msra.mxu0 %v525
    %527 = vmatprep.subr.mxu0 0.0
    %v528 = vand.u32 %v88, 4294901760
    %529 = vmatpush1.msra.mxu0 %v528
    %530 = vmatprep.subr.mxu0 0.0
    %v531 = vand.u32 %v89, 4294901760
    %532 = vmatpush1.msra.mxu0 %v531
    %533 = vmatprep.subr.mxu0 0.0
    %v534 = vand.u32 %v90, 4294901760
    %535 = vmatpush1.msra.mxu0 %v534
    %536 = vmatprep.subr.mxu0 0.0
    %v537 = vand.u32 %v91, 4294901760
    %538 = vmatpush1.msra.mxu0 %v537
    %539 = vmatprep.subr.mxu0 0.0
    %v540 = vand.u32 %v92, 4294901760
    %541 = vmatpush1.msra.mxu0 %v540
    %542 = vmatprep.subr.mxu0 0.0
    %v543 = vand.u32 %v93, 4294901760
    %544 = vmatpush1.msra.mxu0 %v543
    %545 = vmatprep.subr.mxu0 0.0
    %v546 = vand.u32 %v94, 4294901760
    %547 = vmatpush1.msra.mxu0 %v546
    %548 = vmatprep.subr.mxu0 0.0
    %v549 = vand.u32 %v95, 4294901760
    %550 = vmatpush1.msra.mxu0 %v549
    %551 = vmatprep.subr.mxu0 0.0
    %v552 = vand.u32 %v96, 4294901760
    %553 = vmatpush1.msra.mxu0 %v552
    %554 = vmatprep.subr.mxu0 0.0
    %v555 = vand.u32 %v97, 4294901760
    %556 = vmatpush1.msra.mxu0 %v555
    %557 = vmatprep.subr.mxu0 0.0
    %v558 = vand.u32 %v98, 4294901760
    %559 = vmatpush1.msra.mxu0 %v558
    %560 = vmatprep.subr.mxu0 0.0
    %v561 = vand.u32 %v99, 4294901760
    %562 = vmatpush1.msra.mxu0 %v561
    %563 = vmatprep.subr.mxu0 0.0
    %564 = vmatpush1.msra.mxu0 0.0
    %565 = vmatprep.subr.mxu0 0.0
    %566 = vmatpush1.msra.mxu0 0.0
    %567 = vmatprep.subr.mxu0 0.0
    %568 = vmatpush1.msra.mxu0 0.0
    %569 = vmatprep.subr.mxu0 0.0
    %570 = vmatpush1.msra.mxu0 0.0
    %571 = vmatprep.subr.mxu0 0.0
    %572 = vmatpush1.msra.mxu0 0.0
    %573 = vmatprep.subr.mxu0 0.0
    %574 = vmatpush1.msra.mxu0 0.0
    %575 = vmatprep.subr.mxu0 0.0
    %576 = vmatpush1.msra.mxu0 0.0
    %577 = vmatprep.subr.mxu0 0.0
    %578 = vmatpush1.msra.mxu0 0.0
    %579 = vmatprep.subr.mxu0 0.0
    %580 = vmatpush1.msra.mxu0 0.0
    %581 = vmatprep.subr.mxu0 0.0
    %582 = vmatpush1.msra.mxu0 0.0
    %583 = vmatprep.subr.mxu0 0.0
    %584 = vmatpush1.msra.mxu0 0.0
    %585 = vmatprep.subr.mxu0 0.0
    %586 = vmatpush1.msra.mxu0 0.0
    %587 = vmatprep.subr.mxu0 0.0
    %588 = vmatpush1.msra.mxu0 0.0
    %589 = vmatprep.subr.mxu0 0.0
    %590 = vmatpush1.msra.mxu0 0.0
    %591 = vmatprep.subr.mxu0 0.0
    %592 = vmatpush1.msra.mxu0 0.0
    %593 = vmatprep.subr.mxu0 0.0
    %594 = vmatpush1.msra.mxu0 0.0
    %595 = vmatprep.mubr.f32.mxu0 0.0
    %v596 = vand.u32 %v80, 4294901760
    %v597 = vsub.f32 %v80, %v596
    %v598 = vand.u32 %v597, 4294901760
    %599 = vmatmul.mubr.f32.gmra.mrb[0].mxu0 %v598
    %v600 = vpop.f32.mrb[0].mxu0
    %v601 = vadd.f32 %v491, %v600
    %v602 = vpop.f32.mrb[0].mxu0
    %603 = vmatprep.mubr.f32.mxu0 0.0
    %v604 = vand.u32 %v81, 4294901760
    %v605 = vsub.f32 %v81, %v604
    %v606 = vand.u32 %v605, 4294901760
    %607 = vmatmul.mubr.f32.gmra.mrb[0].mxu0 %v606
    %v608 = vpop.f32.mrb[0].mxu0
    %v609 = vadd.f32 %v498, %v608
    %v610 = vpop.f32.mrb[0].mxu0
    %611 = vmatprep.mubr.f32.mxu0 0.0
    %v612 = vand.u32 %v82, 4294901760
    %v613 = vsub.f32 %v82, %v612
    %v614 = vand.u32 %v613, 4294901760
    %615 = vmatmul.mubr.f32.gmra.mrb[0].mxu0 %v614
    %v616 = vpop.f32.mrb[0].mxu0
    %v617 = vadd.f32 %v505, %v616
    %v618 = vpop.f32.mrb[0].mxu0
    %619 = vmatprep.mubr.f32.mxu0 0.0
    %v620 = vand.u32 %v83, 4294901760
    %v621 = vsub.f32 %v83, %v620
    %v622 = vand.u32 %v621, 4294901760
    %623 = vmatmul.mubr.f32.gmra.mrb[0].mxu0 %v622
    %v624 = vpop.f32.mrb[0].mxu0
    %v625 = vadd.f32 %v512, %v624
    %v626 = vpop.f32.mrb[0].mxu0
    %627 = vdwg.mxu0
    %628 = vmatprep.subr.mxu0 0.0
    %v629 = vand.u32 %v84, 4294901760
    %v630 = vsub.f32 %v84, %v629
    %v631 = vand.u32 %v630, 4294901760
    %632 = vmatpush1.msra.mxu0 %v631
    %633 = vmatprep.subr.mxu0 0.0
    %v634 = vand.u32 %v85, 4294901760
    %v635 = vsub.f32 %v85, %v634
    %v636 = vand.u32 %v635, 4294901760
    %637 = vmatpush1.msra.mxu0 %v636
    %638 = vmatprep.subr.mxu0 0.0
    %v639 = vand.u32 %v86, 4294901760
    %v640 = vsub.f32 %v86, %v639
    %v641 = vand.u32 %v640, 4294901760
    %642 = vmatpush1.msra.mxu0 %v641
    %643 = vmatprep.subr.mxu0 0.0
    %v644 = vand.u32 %v87, 4294901760
    %v645 = vsub.f32 %v87, %v644
    %v646 = vand.u32 %v645, 4294901760
    %647 = vmatpush1.msra.mxu0 %v646
    %648 = vmatprep.subr.mxu0 0.0
    %v649 = vand.u32 %v88, 4294901760
    %v650 = vsub.f32 %v88, %v649
    %v651 = vand.u32 %v650, 4294901760
    %652 = vmatpush1.msra.mxu0 %v651
    %653 = vmatprep.subr.mxu0 0.0
    %v654 = vand.u32 %v89, 4294901760
    %v655 = vsub.f32 %v89, %v654
    %v656 = vand.u32 %v655, 4294901760
    %657 = vmatpush1.msra.mxu0 %v656
    %658 = vmatprep.subr.mxu0 0.0
    %v659 = vand.u32 %v90, 4294901760
    %v660 = vsub.f32 %v90, %v659
    %v661 = vand.u32 %v660, 4294901760
    %662 = vmatpush1.msra.mxu0 %v661
    %663 = vmatprep.subr.mxu0 0.0
    %v664 = vand.u32 %v91, 4294901760
    %v665 = vsub.f32 %v91, %v664
    %v666 = vand.u32 %v665, 4294901760
    %667 = vmatpush1.msra.mxu0 %v666
    %668 = vmatprep.subr.mxu0 0.0
    %v669 = vand.u32 %v92, 4294901760
    %v670 = vsub.f32 %v92, %v669
    %v671 = vand.u32 %v670, 4294901760
    %672 = vmatpush1.msra.mxu0 %v671
    %673 = vmatprep.subr.mxu0 0.0
    %v674 = vand.u32 %v93, 4294901760
    %v675 = vsub.f32 %v93, %v674
    %v676 = vand.u32 %v675, 4294901760
    %677 = vmatpush1.msra.mxu0 %v676
    %678 = vmatprep.subr.mxu0 0.0
    %v679 = vand.u32 %v94, 4294901760
    %v680 = vsub.f32 %v94, %v679
    %v681 = vand.u32 %v680, 4294901760
    %682 = vmatpush1.msra.mxu0 %v681
    %683 = vmatprep.subr.mxu0 0.0
    %v684 = vand.u32 %v95, 4294901760
    %v685 = vsub.f32 %v95, %v684
    %v686 = vand.u32 %v685, 4294901760
    %687 = vmatpush1.msra.mxu0 %v686
    %688 = vmatprep.subr.mxu0 0.0
    %v689 = vand.u32 %v96, 4294901760
    %v690 = vsub.f32 %v96, %v689
    %v691 = vand.u32 %v690, 4294901760
    %692 = vmatpush1.msra.mxu0 %v691
    %693 = vmatprep.subr.mxu0 0.0
    %v694 = vand.u32 %v97, 4294901760
    %v695 = vsub.f32 %v97, %v694
    %v696 = vand.u32 %v695, 4294901760
    %697 = vmatpush1.msra.mxu0 %v696
    %698 = vmatprep.subr.mxu0 0.0
    %v699 = vand.u32 %v98, 4294901760
    %v700 = vsub.f32 %v98, %v699
    %v701 = vand.u32 %v700, 4294901760
    %702 = vmatpush1.msra.mxu0 %v701
    %703 = vmatprep.subr.mxu0 0.0
    %v704 = vand.u32 %v99, 4294901760
    %v705 = vsub.f32 %v99, %v704
    %v706 = vand.u32 %v705, 4294901760
    %707 = vmatpush1.msra.mxu0 %v706
    %708 = vmatprep.subr.mxu0 0.0
    %709 = vmatpush1.msra.mxu0 0.0
    %710 = vmatprep.subr.mxu0 0.0
    %711 = vmatpush1.msra.mxu0 0.0
    %712 = vmatprep.subr.mxu0 0.0
    %713 = vmatpush1.msra.mxu0 0.0
    %714 = vmatprep.subr.mxu0 0.0
    %715 = vmatpush1.msra.mxu0 0.0
    %716 = vmatprep.subr.mxu0 0.0
    %717 = vmatpush1.msra.mxu0 0.0
    %718 = vmatprep.subr.mxu0 0.0
    %719 = vmatpush1.msra.mxu0 0.0
    %720 = vmatprep.subr.mxu0 0.0
    %721 = vmatpush1.msra.mxu0 0.0
    %722 = vmatprep.subr.mxu0 0.0
    %723 = vmatpush1.msra.mxu0 0.0
    %724 = vmatprep.subr.mxu0 0.0
    %725 = vmatpush1.msra.mxu0 0.0
    %726 = vmatprep.subr.mxu0 0.0
    %727 = vmatpush1.msra.mxu0 0.0
    %728 = vmatprep.subr.mxu0 0.0
    %729 = vmatpush1.msra.mxu0 0.0
    %730 = vmatprep.subr.mxu0 0.0
    %731 = vmatpush1.msra.mxu0 0.0
    %732 = vmatprep.subr.mxu0 0.0
    %733 = vmatpush1.msra.mxu0 0.0
    %734 = vmatprep.subr.mxu0 0.0
    %735 = vmatpush1.msra.mxu0 0.0
    %736 = vmatprep.subr.mxu0 0.0
    %737 = vmatpush1.msra.mxu0 0.0
    %738 = vmatprep.subr.mxu0 0.0
    %739 = vmatpush1.msra.mxu0 0.0
    %740 = vmatprep.mubr.f32.mxu0 0.0
    %v741 = vand.u32 %v80, 4294901760
    %742 = vmatmul.mubr.f32.gmra.mrb[0].mxu0 %v741
    %v743 = vpop.f32.mrb[0].mxu0
    %v744 = vadd.f32 %v601, %v743
    %v745 = vpop.f32.mrb[0].mxu0
    %746 = vmatprep.mubr.f32.mxu0 0.0
    %v747 = vand.u32 %v81, 4294901760
    %748 = vmatmul.mubr.f32.gmra.mrb[0].mxu0 %v747
    %v749 = vpop.f32.mrb[0].mxu0
    %v750 = vadd.f32 %v609, %v749
    %v751 = vpop.f32.mrb[0].mxu0
    %752 = vmatprep.mubr.f32.mxu0 0.0
    %v753 = vand.u32 %v82, 4294901760
    %754 = vmatmul.mubr.f32.gmra.mrb[0].mxu0 %v753
    %v755 = vpop.f32.mrb[0].mxu0
    %v756 = vadd.f32 %v617, %v755
    %v757 = vpop.f32.mrb[0].mxu0
    %758 = vmatprep.mubr.f32.mxu0 0.0
    %v759 = vand.u32 %v83, 4294901760
    %760 = vmatmul.mubr.f32.gmra.mrb[0].mxu0 %v759
    %v761 = vpop.f32.mrb[0].mxu0
    %v762 = vadd.f32 %v625, %v761
    %v763 = vpop.f32.mrb[0].mxu0
    %764 = vdwg.mxu0
    %765 = vmatprep.subr.mxu0 0.0
    %v766 = vand.u32 %v84, 4294901760
    %767 = vmatpush1.msra.mxu0 %v766
    %768 = vmatprep.subr.mxu0 0.0
    %v769 = vand.u32 %v85, 4294901760
    %770 = vmatpush1.msra.mxu0 %v769
    %771 = vmatprep.subr.mxu0 0.0
    %v772 = vand.u32 %v86, 4294901760
    %773 = vmatpush1.msra.mxu0 %v772
    %774 = vmatprep.subr.mxu0 0.0
    %v775 = vand.u32 %v87, 4294901760
    %776 = vmatpush1.msra.mxu0 %v775
    %777 = vmatprep.subr.mxu0 0.0
    %v778 = vand.u32 %v88, 4294901760
    %779 = vmatpush1.msra.mxu0 %v778
    %780 = vmatprep.subr.mxu0 0.0
    %v781 = vand.u32 %v89, 4294901760
    %782 = vmatpush1.msra.mxu0 %v781
    %783 = vmatprep.subr.mxu0 0.0
    %v784 = vand.u32 %v90, 4294901760
    %785 = vmatpush1.msra.mxu0 %v784
    %786 = vmatprep.subr.mxu0 0.0
    %v787 = vand.u32 %v91, 4294901760
    %788 = vmatpush1.msra.mxu0 %v787
    %789 = vmatprep.subr.mxu0 0.0
    %v790 = vand.u32 %v92, 4294901760
    %791 = vmatpush1.msra.mxu0 %v790
    %792 = vmatprep.subr.mxu0 0.0
    %v793 = vand.u32 %v93, 4294901760
    %794 = vmatpush1.msra.mxu0 %v793
    %795 = vmatprep.subr.mxu0 0.0
    %v796 = vand.u32 %v94, 4294901760
    %797 = vmatpush1.msra.mxu0 %v796
    %798 = vmatprep.subr.mxu0 0.0
    %v799 = vand.u32 %v95, 4294901760
    %800 = vmatpush1.msra.mxu0 %v799
    %801 = vmatprep.subr.mxu0 0.0
    %v802 = vand.u32 %v96, 4294901760
    %803 = vmatpush1.msra.mxu0 %v802
    %804 = vmatprep.subr.mxu0 0.0
    %v805 = vand.u32 %v97, 4294901760
    %806 = vmatpush1.msra.mxu0 %v805
    %807 = vmatprep.subr.mxu0 0.0
    %v808 = vand.u32 %v98, 4294901760
    %809 = vmatpush1.msra.mxu0 %v808
    %810 = vmatprep.subr.mxu0 0.0
    %v811 = vand.u32 %v99, 4294901760
    %812 = vmatpush1.msra.mxu0 %v811
    %813 = vmatprep.subr.mxu0 0.0
    %814 = vmatpush1.msra.mxu0 0.0
    %815 = vmatprep.subr.mxu0 0.0
    %816 = vmatpush1.msra.mxu0 0.0
    %817 = vmatprep.subr.mxu0 0.0
    %818 = vmatpush1.msra.mxu0 0.0
    %819 = vmatprep.subr.mxu0 0.0
    %820 = vmatpush1.msra.mxu0 0.0
    %821 = vmatprep.subr.mxu0 0.0
    %822 = vmatpush1.msra.mxu0 0.0
    %823 = vmatprep.subr.mxu0 0.0
    %824 = vmatpush1.msra.mxu0 0.0
    %825 = vmatprep.subr.mxu0 0.0
    %826 = vmatpush1.msra.mxu0 0.0
    %827 = vmatprep.subr.mxu0 0.0
    %828 = vmatpush1.msra.mxu0 0.0
    %829 = vmatprep.subr.mxu0 0.0
    %830 = vmatpush1.msra.mxu0 0.0
    %831 = vmatprep.subr.mxu0 0.0
    %832 = vmatpush1.msra.mxu0 0.0
    %833 = vmatprep.subr.mxu0 0.0
    %834 = vmatpush1.msra.mxu0 0.0
    %835 = vmatprep.subr.mxu0 0.0
    %836 = vmatpush1.msra.mxu0 0.0
    %837 = vmatprep.subr.mxu0 0.0
    %838 = vmatpush1.msra.mxu0 0.0
    %839 = vmatprep.subr.mxu0 0.0
    %840 = vmatpush1.msra.mxu0 0.0
    %841 = vmatprep.subr.mxu0 0.0
    %842 = vmatpush1.msra.mxu0 0.0
    %843 = vmatprep.subr.mxu0 0.0
    %844 = vmatpush1.msra.mxu0 0.0
    %845 = vmatprep.mubr.f32.mxu0 0.0
    %v846 = vand.u32 %v80, 4294901760
    %847 = vmatmul.mubr.f32.gmra.mrb[0].mxu0 %v846
    %v848 = vpop.f32.mrb[0].mxu0
    %v849 = vadd.f32 %v744, %v848
    %v850 = vpop.f32.mrb[0].mxu0
    %851 = vmatprep.mubr.f32.mxu0 0.0
    %v852 = vand.u32 %v81, 4294901760
    %853 = vmatmul.mubr.f32.gmra.mrb[0].mxu0 %v852
    %v854 = vpop.f32.mrb[0].mxu0
    %v855 = vadd.f32 %v750, %v854
    %v856 = vpop.f32.mrb[0].mxu0
    %857 = vmatprep.mubr.f32.mxu0 0.0
    %v858 = vand.u32 %v82, 4294901760
    %859 = vmatmul.mubr.f32.gmra.mrb[0].mxu0 %v858
    %v860 = vpop.f32.mrb[0].mxu0
    %v861 = vadd.f32 %v756, %v860
    %v862 = vpop.f32.mrb[0].mxu0
    %863 = vmatprep.mubr.f32.mxu0 0.0
    %v864 = vand.u32 %v83, 4294901760
    %865 = vmatmul.mubr.f32.gmra.mrb[0].mxu0 %v864
    %v866 = vpop.f32.mrb[0].mxu0
    %v867 = vadd.f32 %v762, %v866
    %v868 = vpop.f32.mrb[0].mxu0
    %869 = vdwg.mxu0
    %s870 = sld [smem:[#allocation2]]
    %v871 = vstv %s870
    %v872 = vrcp.pop %v871
    %s873 = vtos %v872
    %v874 = vstv %s870
    %v875 = vmul.f32 %v874, %v849
    %v876 = vmul.f32 %v874, %v855
    %v877 = vmul.f32 %v874, %v861
    %v878 = vmul.f32 %v874, %v867
    %v879 = vmax.f32 %v875, 0.0
    %v880 = vmax.f32 %v876, 0.0
    %v881 = vmax.f32 %v877, 0.0
    %v882 = vmax.f32 %v878, 0.0
    %v883 = vand.u32 2147483647, %v875
    %v884 = vand.u32 2147483647, %v876
    %v885 = vand.u32 2147483647, %v877
    %v886 = vand.u32 2147483647, %v878
    %v887 = vsub.f32 0.0, %v883
    %v888 = vsub.f32 0.0, %v884
    %v889 = vsub.f32 0.0, %v885
    %v890 = vsub.f32 0.0, %v886
    %v891 = vmul.f32 %v887, 1.442695
    %v892 = vpow.pop %v891
    %v893 = vmul.f32 %v888, 1.442695
    %v894 = vpow.pop %v893
    %v895 = vmul.f32 %v889, 1.442695
    %v896 = vpow.pop %v895
    %v897 = vmul.f32 %v890, 1.442695
    %v898 = vpow.pop %v897
    %v899 = vadd.f32 %v892, 1.0
    %v900 = vlog2.pop %v899
    %v901 = vmul.f32 %v900, 0.6931472
    %v902 = vmul.f32 -0.5, %v892
    %v903 = vadd.f32 %v902, 1.0
    %v904 = vmul.f32 %v903, %v892
    %v905 = vand.u32 2147483647, %v892
    %vm906 = vcmp.lt.f32.partialorder %v905, 0.0004427343
    %v907 = vsel %vm906, %v904, %v901
    %v908 = vadd.f32 %v894, 1.0
    %v909 = vlog2.pop %v908
    %v910 = vmul.f32 %v909, 0.6931472
    %v911 = vmul.f32 -0.5, %v894
    %v912 = vadd.f32 %v911, 1.0
    %v913 = vmul.f32 %v912, %v894
    %v914 = vand.u32 2147483647, %v894
    %vm915 = vcmp.lt.f32.partialorder %v914, 0.0004427343
    %v916 = vsel %vm915, %v913, %v910
    %v917 = vadd.f32 %v896, 1.0
    %v918 = vlog2.pop %v917
    %v919 = vmul.f32 %v918, 0.6931472
    %v920 = vmul.f32 -0.5, %v896
    %v921 = vadd.f32 %v920, 1.0
    %v922 = vmul.f32 %v921, %v896
    %v923 = vand.u32 2147483647, %v896
    %vm924 = vcmp.lt.f32.partialorder %v923, 0.0004427343
    %v925 = vsel %vm924, %v922, %v919
    %v926 = vadd.f32 %v898, 1.0
    %v927 = vlog2.pop %v926
    %v928 = vmul.f32 %v927, 0.6931472
    %v929 = vmul.f32 -0.5, %v898
    %v930 = vadd.f32 %v929, 1.0
    %v931 = vmul.f32 %v930, %v898
    %v932 = vand.u32 2147483647, %v898
    %vm933 = vcmp.lt.f32.partialorder %v932, 0.0004427343
    %v934 = vsel %vm933, %v931, %v928
    %v935 = vadd.f32 %v879, %v907
    %v936 = vadd.f32 %v880, %v916
    %v937 = vadd.f32 %v881, %v925
    %v938 = vadd.f32 %v882, %v934
    %v939 = vstv %s873
    %v940 = vmul.f32 %v935, %v939
    %v941 = vmul.f32 %v936, %v939
    %v942 = vmul.f32 %v937, %v939
    %v943 = vmul.f32 %v938, %v939
    %v944 = vld [vmem:[%s4] sm:$0xff]
    %v945 = vld [vmem:[%s4 + $0x8] sm:$0xff]
    %v946 = vld [vmem:[%s4 + $0x10] sm:$0xff]
    %v947 = vld [vmem:[%s4 + $0x18] sm:$0xff]
    %vm948 = vcmp.gt.f32.partialorder %v944, 0.0
    %vm949 = vcmp.gt.f32.partialorder %v945, 0.0
    %vm950 = vcmp.gt.f32.partialorder %v946, 0.0
    %vm951 = vcmp.gt.f32.partialorder %v947, 0.0
    %v952 = vlog2.pop %v940
    %v953 = vmul.f32 %v952, 0.6931472
    %v954 = vlog2.pop %v941
    %v955 = vmul.f32 %v954, 0.6931472
    %v956 = vlog2.pop %v942
    %v957 = vmul.f32 %v956, 0.6931472
    %v958 = vlog2.pop %v943
    %v959 = vmul.f32 %v958, 0.6931472
    %v960 = vsel %vm948, %v953, 0.0
    %v961 = vsel %vm949, %v955, 0.0
    %v962 = vsel %vm950, %v957, 0.0
    %v963 = vsel %vm951, %v959, 0.0
    %vm964 = vcmask 7168
    %v965 = vsel %vm964, %v960, 0.0
    %v966 = vsel %vm964, %v961, 0.0
    %v967 = vadd.f32 %v965, %v966
    %v968 = vsel %vm964, %v962, 0.0
    %v969 = vadd.f32 %v967, %v968
    %v970 = vsel %vm964, %v963, 0.0
    %v971 = vadd.f32 %v969, %v970
    %972 = vadd.xlane.f32.xlu0 %v971
    %v973 = vpop.xlane.xlu0 %972
    %v974 = vrot.slane %v973, 4
    %v975 = vadd.f32 %v973, %v974
    %v976 = vrot.slane %v975, 2
    %v977 = vadd.f32 %v975, %v976
    %v978 = vrot.slane %v977, 1
    %v979 = vadd.f32 %v977, %v978
    %s980 = vtos %v979
    %v981 = vld [vmem:[%s5] sm:$0xff]
    %v982 = vld [vmem:[%s5 + $0x8] sm:$0xff]
    %v983 = vld [vmem:[%s5 + $0x10] sm:$0xff]
    %v984 = vld [vmem:[%s5 + $0x18] sm:$0xff]
    %v985 = vmul.f32 %v981, %v940
    %v986 = vmul.f32 %v982, %v941
    %v987 = vmul.f32 %v983, %v942
    %v988 = vmul.f32 %v984, %v943
    %v989 = vsel %vm964, %v985, 0.0
    %v990 = vsel %vm964, %v986, 0.0
    %v991 = vadd.f32 %v989, %v990
    %v992 = vsel %vm964, %v987, 0.0
    %v993 = vadd.f32 %v991, %v992
    %v994 = vsel %vm964, %v988, 0.0
    %v995 = vadd.f32 %v993, %v994
    %996 = vadd.xlane.f32.xlu0 %v995
    %v997 = vpop.xlane.xlu0 %996
    %v998 = vrot.slane %v997, 4
    %v999 = vadd.f32 %v997, %v998
    %v1000 = vrot.slane %v999, 2
    %v1001 = vadd.f32 %v999, %v1000
    %v1002 = vrot.slane %v1001, 1
    %v1003 = vadd.f32 %v1001, %v1002
    %s1004 = vtos %v1003
    %s1005 = ssub.f32 %s1004, %s980
    %s1006 = scalar_lea.smem [#allocation3], 0
    %1007 = sst [smem:[%s1006]] %s1005
    // Predicated region
    $region26: #{rule_based_tpp_forward.1} parent=1 // pred_check
      _
    $region27: #{rule_based_tpp_forward.1} parent=1 // pred_check_branch
      %1009 = sbr.rel (0) target = $region29
    $region28: #{rule_based_tpp_forward.1} parent=1 // pred_region
      %s1011 = ssub.s32 16, 16
      %1012 = vsyncadd [#allocation4], %s1011
      %1015 = dma.smem_to_hbm [#allocation3], 16, %s6, [#allocation4]
    $region29: #{rule_based_tpp_forward.1} parent=1 // pred_fallthru
      _
    // Predicated region
    $region30: #{rule_based_tpp_forward.1} parent=1 // pred_check
      _
    $region31: #{rule_based_tpp_forward.1} parent=1 // pred_check_branch
      %1017 = sbr.rel (0) target = $region33
    $region32: #{rule_based_tpp_forward.1} parent=1 // pred_region
      %1018 = dma.done [#allocation4], 16
    $region33: #{rule_based_tpp_forward.1} parent=1 // pred_fallthru
      _
    %1019 = sfence
    %1020 = vsyncpa [#allocation4], 1

</llo_original>
